<compile_context>
chip_gen: v5e
topology: v5e:2x2
jax: 0.10.0
libtpu: 0.0.40
codegen_flags: <defaults>
</compile_context>

<pallas_src>
import jax
import jax.numpy as jnp
import numpy as np
from jax.experimental import pallas as pl
from jax.experimental.pallas import tpu as pltpu


def _round_up(x: int, m: int) -> int:
    return ((x + m - 1) // m) * m


def _cdiv(a: int, b: int) -> int:
    return (a + b - 1) // b


# --------------------------------------------------------------------------
# Kernel
# --------------------------------------------------------------------------
def deeponet_kernel(u_ref, y_ref,
                    wb1_ref, bb1_ref, wb2_ref, bb2_ref,
                    wt1_ref, bt1_ref, wt2_ref, bt2_ref,
                    tau_ref, out_ref):
    """One batch tile; compute in batch-on-lanes layout.

    u_ref  : (TILE_B, du)   native-layout tile of u
    y_ref  : (TILE_B, dy)   native-layout tile of y
    w*1    : (h, d_in)      torch Linear layout (out, in)
    b*1    : (h, 1)
    w*2    : (p, h)
    b*2    : (p, 1)
    tau    : (1, 1)         scalar in SMEM
    out    : (1, TILE_B)    lane-dense output tile
    """
    # Layer 1: contract the feature dim of the native-layout batch tile against
    # the weight's `in` dim (NT matmul) -> (h, TILE_B), batch on lanes.  The
    # activation transpose therefore never materializes in HBM or VMEM.
    nt = (((1,), (1,)), ((), ()))
    hb = jnp.tanh(
        jax.lax.dot_general(wb1_ref[...], u_ref[...], nt,
                            preferred_element_type=jnp.float32) + bb1_ref[...])
    ht = jnp.tanh(
        jax.lax.dot_general(wt1_ref[...], y_ref[...], nt,
                            preferred_element_type=jnp.float32) + bt1_ref[...])
    # Layer 2: (p, h) @ (h, TILE_B) -> (p, TILE_B).
    zb = jnp.dot(wb2_ref[...], hb, preferred_element_type=jnp.float32) + bb2_ref[...]
    zt = jnp.dot(wt2_ref[...], ht, preferred_element_type=jnp.float32) + bt2_ref[...]
    # einsum('bi,bi->b'): elementwise product + sublane reduce -> lane-dense row.
    out_ref[...] = jnp.sum(zb * zt, axis=0, keepdims=True) + tau_ref[0, 0]


# --------------------------------------------------------------------------
# Host-side parameter packing (tiny arrays; no big-tensor wrapper traffic)
# --------------------------------------------------------------------------
def pack_params(params):
    """Reorient per-network (in,out)/(1,out) params to (out,in)/(out,1) f32."""
    (wb1, bb1, wb2, bb2, wt1, bt1, wt2, bt2, tau) = params
    f32 = jnp.float32
    return (wb1.T.astype(f32), bb1.T.astype(f32),   # (h, du), (h, 1)
            wb2.T.astype(f32), bb2.T.astype(f32),   # (p, h),  (p, 1)
            wt1.T.astype(f32), bt1.T.astype(f32),   # (h, dy), (h, 1)
            wt2.T.astype(f32), bt2.T.astype(f32),   # (p, h),  (p, 1)
            tau.astype(f32))                        # (1, 1)


# --------------------------------------------------------------------------
# Tiling: generation-aware VMEM budget
# --------------------------------------------------------------------------
def _scoped_vmem_limit() -> int:
    """Scoped-VMEM limit to request, derived from the chip's physical VMEM."""
    try:
        cap = int(pltpu.get_tpu_info().vmem_capacity_bytes)
    except Exception:
        cap = 64 * 1024 * 1024  # conservative fallback (v7x-sized VMEM)
    return min(cap // 2, 64 * 1024 * 1024)


def _choose_tile_b(batch, du, dy, h, p, vmem_limit) -> int:
    lane = lambda d: _round_up(max(int(d), 1), 128)
    # Conservative per-batch-element VMEM footprint (f32):
    #   - u/y input tiles (minor dim lane-padded to 128), double-buffered
    #   - (1, tile_b) output tile (padded to 8 sublanes), double-buffered
    #   - live layer intermediates (pre-act / h / z / product, branch+trunk)
    per_elem = 4 * 2 * (lane(du) + lane(dy)) + 4 * 8 * 2 + 4 * 3 * (h + p)
    budget = int(0.6 * vmem_limit)  # headroom for weights + compiler scratch
    tile_b = max(128, min(32768, (budget // per_elem) // 128 * 128))
    # Never exceed the (128-aligned) batch.
    tile_b = min(tile_b, _round_up(batch, 128))
    # Medium/large batches: guarantee >= 2 grid steps so the "parallel" batch
    # axis can shard across both v7x TensorCores (noise cost on v5e/v6e).
    if batch > 1024 and _cdiv(batch, tile_b) == 1:
        tile_b = min(tile_b, _round_up(_cdiv(batch, 2), 128))
    return tile_b


# --------------------------------------------------------------------------
# Forward wrapper
# --------------------------------------------------------------------------
def deeponet_forward(u, y, params):
    """u: (batch, du), y: (batch, dy). Returns (batch, 1) float32."""
    (wb1, bb1, wb2, bb2, wt1, bt1, wt2, bt2, tau) = pack_params(params)

    batch, du = u.shape
    dy = y.shape[1]
    h = wb1.shape[0]
    p = wb2.shape[0]

    vmem_limit = _scoped_vmem_limit()
    tile_b = _choose_tile_b(batch, du, dy, h, p, vmem_limit)
    grid = (_cdiv(batch, tile_b),)
    out_cols = _round_up(batch, 128)  # lane-aligned output slab (tiny array)

    u = u.astype(jnp.float32)
    y = y.astype(jnp.float32)

    weight_bytes = 4 * sum(int(a.size) for a in
                           (wb1, bb1, wb2, bb2, wt1, bt1, wt2, bt2, tau))
    cost = pl.CostEstimate(
        flops=int(2 * batch * (du * h + dy * h + 2 * h * p) + 3 * batch * p),
        transcendentals=int(2 * batch * h),
        bytes_accessed=int(4 * batch * (du + dy) + 4 * batch + weight_bytes),
    )

    resident = lambda i: (0, 0)  # weights: same block every step -> VMEM-resident

    out = pl.pallas_call(
        deeponet_kernel,
        out_shape=jax.ShapeDtypeStruct((1, out_cols), jnp.float32),
        grid=grid,
        in_specs=[
            # Activations: a fresh native-layout batch tile each grid step.
            pl.BlockSpec((tile_b, du), lambda i: (i, 0)),
            pl.BlockSpec((tile_b, dy), lambda i: (i, 0)),
            # Branch weights / biases.
            pl.BlockSpec((h, du), resident),
            pl.BlockSpec((h, 1), resident),
            pl.BlockSpec((p, h), resident),
            pl.BlockSpec((p, 1), resident),
            # Trunk weights / biases.
            pl.BlockSpec((h, dy), resident),
            pl.BlockSpec((h, 1), resident),
            pl.BlockSpec((p, h), resident),
            pl.BlockSpec((p, 1), resident),
            # Scalar bias tau lives in SMEM.
            pl.BlockSpec(memory_space=pltpu.MemorySpace.SMEM),
        ],
        out_specs=pl.BlockSpec((1, tile_b), lambda i: (0, i)),
        compiler_params=pltpu.CompilerParams(
            dimension_semantics=("parallel",),
            vmem_limit_bytes=vmem_limit,
        ),
        cost_estimate=cost,
    )(u, y, wb1, bb1, wb2, bb2, wt1, bt1, wt2, bt2, tau)

    return out[:, :batch].T  # (batch, 1)


# --------------------------------------------------------------------------
# Init + pure-JAX reference (matches the PyTorch module)
# --------------------------------------------------------------------------
def xavier_normal(key, fan_in, fan_out):
    std = np.sqrt(2.0 / (fan_in + fan_out))
    # Stored as (in, out); distribution identical to torch xavier_normal_ on (out, in).
    return std * jax.random.normal(key, (fan_in, fan_out), dtype=jnp.float32)


def init_params(key, du, dy, hidden, p):
    ks = jax.random.split(key, 5)
    # Branch MLP: [du, hidden, p], biases zero (per _init_weights)
    wb1 = xavier_normal(ks[0], du, hidden)
    bb1 = jnp.zeros((1, hidden), jnp.float32)
    wb2 = xavier_normal(ks[1], hidden, p)
    bb2 = jnp.zeros((1, p), jnp.float32)
    # Trunk MLP: [dy, hidden, p]
    wt1 = xavier_normal(ks[2], dy, hidden)
    bt1 = jnp.zeros((1, hidden), jnp.float32)
    wt2 = xavier_normal(ks[3], hidden, p)
    bt2 = jnp.zeros((1, p), jnp.float32)
    # tau ~ U[0, 1) like torch.rand(1); shaped (1,1) for the SMEM scalar.
    tau = jax.random.uniform(ks[4], (1, 1), dtype=jnp.float32)
    return (wb1, bb1, wb2, bb2, wt1, bt1, wt2, bt2, tau)


def deeponet_ref(u, y, params):
    (wb1, bb1, wb2, bb2, wt1, bt1, wt2, bt2, tau) = params
    B = jnp.tanh(u @ wb1 + bb1) @ wb2 + bb2
    T = jnp.tanh(y @ wt1 + bt1) @ wt2 + bt2
    s = jnp.sum(B * T, axis=-1, keepdims=True)
    return s + tau[0, 0]


if __name__ == "__main__":
    # Small deterministic example:
    #   branch = {'type': 'MLP', 'layer_size': [16, 32, 32], 'activation': 'tanh'}
    #   trunk  = {'type': 'MLP', 'layer_size': [8, 32, 32],  'activation': 'tanh'}
    batch, du, dy, hidden, p = 8, 16, 8, 32, 32

    key = jax.random.PRNGKey(0)
    k_u, k_y, k_p = jax.random.split(key, 3)
    u = jax.random.normal(k_u, (batch, du), dtype=jnp.float32)
    y = jax.random.normal(k_y, (batch, dy), dtype=jnp.float32)
    params = init_params(k_p, du, dy, hidden, p)

    out = deeponet_forward(u, y, params)
    out = jax.block_until_ready(out)

    ref = deeponet_ref(u, y, params)
    assert out.shape == (batch, 1)
    np.testing.assert_allclose(np.asarray(out), np.asarray(ref),
                               rtol=1e-5, atol=1e-5)
    print("KERNEL_OK")
</pallas_src>

<mosaic_0001>
module attributes {stable_mosaic.version = 11 : i64} {
  func.func @deeponet_kernel(%arg0: i32, %arg1: memref<128x16xf32, #tpu.memory_space<vmem>>, %arg2: memref<128x8xf32, #tpu.memory_space<vmem>>, %arg3: memref<32x16xf32, #tpu.memory_space<vmem>>, %arg4: memref<32x1xf32, #tpu.memory_space<vmem>>, %arg5: memref<32x32xf32, #tpu.memory_space<vmem>>, %arg6: memref<32x1xf32, #tpu.memory_space<vmem>>, %arg7: memref<32x8xf32, #tpu.memory_space<vmem>>, %arg8: memref<32x1xf32, #tpu.memory_space<vmem>>, %arg9: memref<32x32xf32, #tpu.memory_space<vmem>>, %arg10: memref<32x1xf32, #tpu.memory_space<vmem>>, %arg11: memref<1x1xf32, #tpu.memory_space<smem>>, %arg12: memref<1x128xf32, #tpu.memory_space<vmem>>) attributes {dimension_semantics = [#tpu.dimension_semantics<parallel>], iteration_bounds = array<i64: 1>, scalar_prefetch = 0 : i64, scratch_operands = 0 : i64, tpu.core_type = #tpu.core_type<tc>, window_params = [{transform_indices = @transform_0, window_bounds = array<i64: 128, 16>}, {transform_indices = @transform_1, window_bounds = array<i64: 128, 8>}, {pipeline_mode = #tpu.pipeline_mode<synchronous>, transform_indices = @transform_2, window_bounds = array<i64: 32, 16>}, {pipeline_mode = #tpu.pipeline_mode<synchronous>, transform_indices = @transform_3, window_bounds = array<i64: 32, 1>}, {pipeline_mode = #tpu.pipeline_mode<synchronous>, transform_indices = @transform_4, window_bounds = array<i64: 32, 32>}, {pipeline_mode = #tpu.pipeline_mode<synchronous>, transform_indices = @transform_5, window_bounds = array<i64: 32, 1>}, {pipeline_mode = #tpu.pipeline_mode<synchronous>, transform_indices = @transform_6, window_bounds = array<i64: 32, 8>}, {pipeline_mode = #tpu.pipeline_mode<synchronous>, transform_indices = @transform_7, window_bounds = array<i64: 32, 1>}, {pipeline_mode = #tpu.pipeline_mode<synchronous>, transform_indices = @transform_8, window_bounds = array<i64: 32, 32>}, {pipeline_mode = #tpu.pipeline_mode<synchronous>, transform_indices = @transform_9, window_bounds = array<i64: 32, 1>}, {transform_indices = @transform_10, window_bounds = array<i64: 1, 1>}, {transform_indices = @transform_11, window_bounds = array<i64: 1, 128>}]} {
    %c0 = arith.constant 0 : index
    %c0_0 = arith.constant 0 : index
    %0 = vector.load %arg3[%c0, %c0_0] : memref<32x16xf32, #tpu.memory_space<vmem>>, vector<32x16xf32>
    %c0_1 = arith.constant 0 : index
    %c0_2 = arith.constant 0 : index
    %1 = vector.load %arg1[%c0_1, %c0_2] : memref<128x16xf32, #tpu.memory_space<vmem>>, vector<128x16xf32>
    %cst = arith.constant dense<0.000000e+00> : vector<32x128xf32>
    %2 = tpu.matmul %0, %1, %cst {dimension_numbers = #tpu.dot_dimension_numbers<[1], [1], [0], [0], [0, 0, 1, 0], [], []>} : vector<32x16xf32>, vector<128x16xf32>, vector<32x128xf32> -> vector<32x128xf32>
    %c0_3 = arith.constant 0 : index
    %c0_4 = arith.constant 0 : index
    %3 = vector.load %arg4[%c0_3, %c0_4] : memref<32x1xf32, #tpu.memory_space<vmem>>, vector<32x1xf32>
    %4 = vector.broadcast %3 : vector<32x1xf32> to vector<32x128xf32>
    %5 = arith.addf %2, %4 : vector<32x128xf32>
    %6 = math.tanh %5 : vector<32x128xf32>
    %c0_5 = arith.constant 0 : index
    %c0_6 = arith.constant 0 : index
    %7 = vector.load %arg7[%c0_5, %c0_6] : memref<32x8xf32, #tpu.memory_space<vmem>>, vector<32x8xf32>
    %c0_7 = arith.constant 0 : index
    %c0_8 = arith.constant 0 : index
    %8 = vector.load %arg2[%c0_7, %c0_8] : memref<128x8xf32, #tpu.memory_space<vmem>>, vector<128x8xf32>
    %cst_9 = arith.constant dense<0.000000e+00> : vector<32x128xf32>
    %9 = tpu.matmul %7, %8, %cst_9 {dimension_numbers = #tpu.dot_dimension_numbers<[1], [1], [0], [0], [0, 0, 1, 0], [], []>} : vector<32x8xf32>, vector<128x8xf32>, vector<32x128xf32> -> vector<32x128xf32>
    %c0_10 = arith.constant 0 : index
    %c0_11 = arith.constant 0 : index
    %10 = vector.load %arg8[%c0_10, %c0_11] : memref<32x1xf32, #tpu.memory_space<vmem>>, vector<32x1xf32>
    %11 = vector.broadcast %10 : vector<32x1xf32> to vector<32x128xf32>
    %12 = arith.addf %9, %11 : vector<32x128xf32>
    %13 = math.tanh %12 : vector<32x128xf32>
    %c0_12 = arith.constant 0 : index
    %c0_13 = arith.constant 0 : index
    %14 = vector.load %arg5[%c0_12, %c0_13] : memref<32x32xf32, #tpu.memory_space<vmem>>, vector<32x32xf32>
    %cst_14 = arith.constant dense<0.000000e+00> : vector<32x128xf32>
    %15 = tpu.matmul %14, %6, %cst_14 {dimension_numbers = #tpu.dot_dimension_numbers<[1], [0], [0], [1], [0, 0, 1, 1], [], []>} : vector<32x32xf32>, vector<32x128xf32>, vector<32x128xf32> -> vector<32x128xf32>
    %c0_15 = arith.constant 0 : index
    %c0_16 = arith.constant 0 : index
    %16 = vector.load %arg6[%c0_15, %c0_16] : memref<32x1xf32, #tpu.memory_space<vmem>>, vector<32x1xf32>
    %17 = vector.broadcast %16 : vector<32x1xf32> to vector<32x128xf32>
    %18 = arith.addf %15, %17 : vector<32x128xf32>
    %c0_17 = arith.constant 0 : index
    %c0_18 = arith.constant 0 : index
    %19 = vector.load %arg9[%c0_17, %c0_18] : memref<32x32xf32, #tpu.memory_space<vmem>>, vector<32x32xf32>
    %cst_19 = arith.constant dense<0.000000e+00> : vector<32x128xf32>
    %20 = tpu.matmul %19, %13, %cst_19 {dimension_numbers = #tpu.dot_dimension_numbers<[1], [0], [0], [1], [0, 0, 1, 1], [], []>} : vector<32x32xf32>, vector<32x128xf32>, vector<32x128xf32> -> vector<32x128xf32>
    %c0_20 = arith.constant 0 : index
    %c0_21 = arith.constant 0 : index
    %21 = vector.load %arg10[%c0_20, %c0_21] : memref<32x1xf32, #tpu.memory_space<vmem>>, vector<32x1xf32>
    %22 = vector.broadcast %21 : vector<32x1xf32> to vector<32x128xf32>
    %23 = arith.addf %20, %22 : vector<32x128xf32>
    %24 = arith.mulf %18, %23 : vector<32x128xf32>
    %cst_22 = arith.constant dense<0.000000e+00> : vector<128xf32>
    %25 = vector.multi_reduction <add>, %24, %cst_22 [0] : vector<32x128xf32> to vector<128xf32>
    %26 = vector.shape_cast %25 : vector<128xf32> to vector<1x128xf32>
    %c0_23 = arith.constant 0 : index
    %c0_24 = arith.constant 0 : index
    %27 = memref.load %arg11[%c0_23, %c0_24] : memref<1x1xf32, #tpu.memory_space<smem>>
    %28 = vector.broadcast %27 : f32 to vector<1x128xf32>
    %29 = arith.addf %26, %28 : vector<1x128xf32>
    %c0_25 = arith.constant 0 : index
    %c0_26 = arith.constant 0 : index
    %30 = vector.load %arg12[%c0_25, %c0_26] : memref<1x128xf32, #tpu.memory_space<vmem>>, vector<1x128xf32>
    tpu.vector_store %arg12[%c0_25, %c0_26], %29 {strides = array<i32>} : memref<1x128xf32, #tpu.memory_space<vmem>>, vector<1x128xf32>,
    return
  }
  func.func @transform_0(%arg0: i32) -> (i32, i32) {
    %c0_i32 = arith.constant 0 : i32
    %c0_i32_0 = arith.constant 0 : i32
    return %arg0, %c0_i32 : i32, i32
  }
  func.func @transform_1(%arg0: i32) -> (i32, i32) {
    %c0_i32 = arith.constant 0 : i32
    %c0_i32_0 = arith.constant 0 : i32
    return %arg0, %c0_i32 : i32, i32
  }
  func.func @transform_2(%arg0: i32) -> (i32, i32) {
    %c0_i32 = arith.constant 0 : i32
    %c0_i32_0 = arith.constant 0 : i32
    %c0_i32_1 = arith.constant 0 : i32
    return %c0_i32, %c0_i32_0 : i32, i32
  }
  func.func @transform_3(%arg0: i32) -> (i32, i32) {
    %c0_i32 = arith.constant 0 : i32
    %c0_i32_0 = arith.constant 0 : i32
    %c0_i32_1 = arith.constant 0 : i32
    return %c0_i32, %c0_i32_0 : i32, i32
  }
  func.func @transform_4(%arg0: i32) -> (i32, i32) {
    %c0_i32 = arith.constant 0 : i32
    %c0_i32_0 = arith.constant 0 : i32
    %c0_i32_1 = arith.constant 0 : i32
    return %c0_i32, %c0_i32_0 : i32, i32
  }
  func.func @transform_5(%arg0: i32) -> (i32, i32) {
    %c0_i32 = arith.constant 0 : i32
    %c0_i32_0 = arith.constant 0 : i32
    %c0_i32_1 = arith.constant 0 : i32
    return %c0_i32, %c0_i32_0 : i32, i32
  }
  func.func @transform_6(%arg0: i32) -> (i32, i32) {
    %c0_i32 = arith.constant 0 : i32
    %c0_i32_0 = arith.constant 0 : i32
    %c0_i32_1 = arith.constant 0 : i32
    return %c0_i32, %c0_i32_0 : i32, i32
  }
  func.func @transform_7(%arg0: i32) -> (i32, i32) {
    %c0_i32 = arith.constant 0 : i32
    %c0_i32_0 = arith.constant 0 : i32
    %c0_i32_1 = arith.constant 0 : i32
    return %c0_i32, %c0_i32_0 : i32, i32
  }
  func.func @transform_8(%arg0: i32) -> (i32, i32) {
    %c0_i32 = arith.constant 0 : i32
    %c0_i32_0 = arith.constant 0 : i32
    %c0_i32_1 = arith.constant 0 : i32
    return %c0_i32, %c0_i32_0 : i32, i32
  }
  func.func @transform_9(%arg0: i32) -> (i32, i32) {
    %c0_i32 = arith.constant 0 : i32
    %c0_i32_0 = arith.constant 0 : i32
    %c0_i32_1 = arith.constant 0 : i32
    return %c0_i32, %c0_i32_0 : i32, i32
  }
  func.func @transform_10(%arg0: i32) -> (i32, i32) {
    %c0_i32 = arith.constant 0 : i32
    %c0_i32_0 = arith.constant 0 : i32
    %c0_i32_1 = arith.constant 0 : i32
    return %c0_i32, %c0_i32_0 : i32, i32
  }
  func.func @transform_11(%arg0: i32) -> (i32, i32) {
    %c0_i32 = arith.constant 0 : i32
    %c0_i32_0 = arith.constant 0 : i32
    return %c0_i32, %arg0 : i32, i32
  }
}

</mosaic_0001>

<llo_original>
// kernel: tpu_custom_call.1
$region0: #{tpu_custom_call.1}
  #allocation0 [shape = 'u32[]', space=smem, size = 0x4, offset = 0x4, fixed_abs, tag = 'smem constant byte address 0x4 - core index']
  #allocation1 [shape = 'u32[72,128]{1,0:T(1,128)}', space=vmem, size = 0x9000, scoped, tag = 'internal scratch']
  #allocation2 [shape = 'f32[1,1]{1,0:T(1,128)S(6)}', space=smem, size = 0x200, scoped, tag = 'scoped memory for tpu_custom_call.1']
  %s0 = inlined_call_operand.vmem [shape: f32[8,16], index: 0, kind: input, shape index: {}]
  %s1 = inlined_call_operand.vmem [shape: f32[8,8], index: 1, kind: input, shape index: {}]
  %s2 = inlined_call_operand.vmem [shape: f32[32,16], index: 2, kind: input, shape index: {}]
  %s3 = inlined_call_operand.vmem [shape: f32[32,1], index: 3, kind: input, shape index: {}]
  %s4 = inlined_call_operand.vmem [shape: f32[32,32], index: 4, kind: input, shape index: {}]
  %s5 = inlined_call_operand.vmem [shape: f32[32,1], index: 5, kind: input, shape index: {}]
  %s6 = inlined_call_operand.vmem [shape: f32[32,8], index: 6, kind: input, shape index: {}]
  %s7 = inlined_call_operand.vmem [shape: f32[32,1], index: 7, kind: input, shape index: {}]
  %s8 = inlined_call_operand.vmem [shape: f32[32,32], index: 8, kind: input, shape index: {}]
  %s9 = inlined_call_operand.vmem [shape: f32[32,1], index: 9, kind: input, shape index: {}]
  %s10 = inlined_call_operand.<no memory space> [shape: f32[1,1], index: 10, kind: input, shape index: {}]
  %s11 = inlined_call_operand.hbm [shape: f32[1,128], index: 11, kind: output, shape index: {}]
  %s12 = sld [smem:[#allocation0]]
  $region54: #{tpu_custom_call.1} parent=0
    _
  %s14 = ssub.s32 1, %s12
  %s15 = scalar_select 0, %s14, %s12
  %16 = sst [smem:[#allocation2]] %s10
  $region1: #{tpu_custom_call.1} parent=0
    #allocation3 [shape = 'u8[512]{0}', space=vmem, size = 0x400, scoped, tag = 'output window, operand 0, single buffered']
    #allocation4 [shape = 's32[1]{0}', space=sflag, size = 0x4, scoped, tag = 'scoped memory for tpu_custom_call.1']
    %17 = vsyncpa [#allocation4], 0
    // Predicated region
    $region2: #{tpu_custom_call.1} parent=1 // pred_check
      _
    $region3: #{tpu_custom_call.1} parent=1 // pred_check_branch
      %19 = sbr.rel (0) target = $region5
    $region4: #{tpu_custom_call.1} parent=1 // pred_region
      _
    $region5: #{tpu_custom_call.1} parent=1 // pred_fallthru
      _
    // Predicated region
    $region6: #{tpu_custom_call.1} parent=1 // pred_check
      _
    $region7: #{tpu_custom_call.1} parent=1 // pred_check_branch
      %21 = sbr.rel (0) target = $region9
    $region8: #{tpu_custom_call.1} parent=1 // pred_region
      _
    $region9: #{tpu_custom_call.1} parent=1 // pred_fallthru
      _
    // Predicated region
    $region10: #{tpu_custom_call.1} parent=1 // pred_check
      _
    $region11: #{tpu_custom_call.1} parent=1 // pred_check_branch
      %23 = sbr.rel (0) target = $region13
    $region12: #{tpu_custom_call.1} parent=1 // pred_region
      _
    $region13: #{tpu_custom_call.1} parent=1 // pred_fallthru
      _
    // Predicated region
    $region14: #{tpu_custom_call.1} parent=1 // pred_check
      _
    $region15: #{tpu_custom_call.1} parent=1 // pred_check_branch
      %25 = sbr.rel (0) target = $region17
    $region16: #{tpu_custom_call.1} parent=1 // pred_region
      _
    $region17: #{tpu_custom_call.1} parent=1 // pred_fallthru
      _
    // Predicated region
    $region18: #{tpu_custom_call.1} parent=1 // pred_check
      _
    $region19: #{tpu_custom_call.1} parent=1 // pred_check_branch
      %27 = sbr.rel (0) target = $region21
    $region20: #{tpu_custom_call.1} parent=1 // pred_region
      _
    $region21: #{tpu_custom_call.1} parent=1 // pred_fallthru
      _
    // Predicated region
    $region22: #{tpu_custom_call.1} parent=1 // pred_check
      _
    $region23: #{tpu_custom_call.1} parent=1 // pred_check_branch
      %29 = sbr.rel (0) target = $region25
    $region24: #{tpu_custom_call.1} parent=1 // pred_region
      _
    $region25: #{tpu_custom_call.1} parent=1 // pred_fallthru
      _
    // Predicated region
    $region26: #{tpu_custom_call.1} parent=1 // pred_check
      _
    $region27: #{tpu_custom_call.1} parent=1 // pred_check_branch
      %31 = sbr.rel (0) target = $region29
    $region28: #{tpu_custom_call.1} parent=1 // pred_region
      _
    $region29: #{tpu_custom_call.1} parent=1 // pred_fallthru
      _
    // Predicated region
    $region30: #{tpu_custom_call.1} parent=1 // pred_check
      _
    $region31: #{tpu_custom_call.1} parent=1 // pred_check_branch
      %33 = sbr.rel (0) target = $region33
    $region32: #{tpu_custom_call.1} parent=1 // pred_region
      _
    $region33: #{tpu_custom_call.1} parent=1 // pred_fallthru
      _
    // Predicated region
    $region34: #{tpu_custom_call.1} parent=1 // pred_check
      _
    $region35: #{tpu_custom_call.1} parent=1 // pred_check_branch
      %35 = sbr.rel (0) target = $region37
    $region36: #{tpu_custom_call.1} parent=1 // pred_region
      _
    $region37: #{tpu_custom_call.1} parent=1 // pred_fallthru
      _
    // Predicated region
    $region38: #{tpu_custom_call.1} parent=1 // pred_check
      _
    $region39: #{tpu_custom_call.1} parent=1 // pred_check_branch
      %37 = sbr.rel (0) target = $region41
    $region40: #{tpu_custom_call.1} parent=1 // pred_region
      _
    $region41: #{tpu_custom_call.1} parent=1 // pred_fallthru
      _
    // Predicated region
    $region42: #{tpu_custom_call.1} parent=1 // pred_check
      _
    $region43: #{tpu_custom_call.1} parent=1 // pred_check_branch
      %39 = sbr.rel (0) target = $region45
    $region44: #{tpu_custom_call.1} parent=1 // pred_region
      _
    $region45: #{tpu_custom_call.1} parent=1 // pred_fallthru
      _
    %v40 = vld [vmem:[%s2] sm:$0xff]
    %v41 = vld [vmem:[%s2 + $0x8] sm:$0xff]
    %v42 = vld [vmem:[%s2 + $0x10] sm:$0xff]
    %v43 = vld [vmem:[%s2 + $0x18] sm:$0xff]
    %v44 = vld [vmem:[%s0] sm:$0xff]
    %v45 = vld [vmem:[%s0 + $0x8] sm:$0xff]
    %v46 = vld [vmem:[%s0 + $0x10] sm:$0xff]
    %v47 = vld [vmem:[%s0 + $0x18] sm:$0xff]
    %v48 = vld [vmem:[%s0 + $0x20] sm:$0xff]
    %v49 = vld [vmem:[%s0 + $0x28] sm:$0xff]
    %v50 = vld [vmem:[%s0 + $0x30] sm:$0xff]
    %v51 = vld [vmem:[%s0 + $0x38] sm:$0xff]
    %v52 = vld [vmem:[%s0 + $0x40] sm:$0xff]
    %v53 = vld [vmem:[%s0 + $0x48] sm:$0xff]
    %v54 = vld [vmem:[%s0 + $0x50] sm:$0xff]
    %v55 = vld [vmem:[%s0 + $0x58] sm:$0xff]
    %v56 = vld [vmem:[%s0 + $0x60] sm:$0xff]
    %v57 = vld [vmem:[%s0 + $0x68] sm:$0xff]
    %v58 = vld [vmem:[%s0 + $0x70] sm:$0xff]
    %v59 = vld [vmem:[%s0 + $0x78] sm:$0xff]
    %v60 = vld [vmem:[%s3] sm:$0xff]
    %v61 = vld [vmem:[%s3 + $0x8] sm:$0xff]
    %v62 = vld [vmem:[%s3 + $0x10] sm:$0xff]
    %v63 = vld [vmem:[%s3 + $0x18] sm:$0xff]
    %65 = vset.pattern.permute.xlu0 0
    %66 = vperm.xlu0 %65, %v60
    %v67 = vpop.permute.xlu0 %66
    %70 = vset.pattern.permute.xlu0 0
    %71 = vperm.xlu0 %70, %v61
    %v72 = vpop.permute.xlu0 %71
    %75 = vset.pattern.permute.xlu0 0
    %76 = vperm.xlu0 %75, %v62
    %v77 = vpop.permute.xlu0 %76
    %80 = vset.pattern.permute.xlu0 0
    %81 = vperm.xlu0 %80, %v63
    %v82 = vpop.permute.xlu0 %81
    %vm84 = vcmask 130048
    %v86 = vsel %vm84, %v40, 0
    %v89 = vsel %vm84, %v41, 0
    %v92 = vsel %vm84, %v42, 0
    %v95 = vsel %vm84, %v43, 0
    %v98 = vsel %vm84, %v44, 0
    %v101 = vsel %vm84, %v45, 0
    %v104 = vsel %vm84, %v46, 0
    %v107 = vsel %vm84, %v47, 0
    %v110 = vsel %vm84, %v48, 0
    %v113 = vsel %vm84, %v49, 0
    %v116 = vsel %vm84, %v50, 0
    %v119 = vsel %vm84, %v51, 0
    %v122 = vsel %vm84, %v52, 0
    %v125 = vsel %vm84, %v53, 0
    %v128 = vsel %vm84, %v54, 0
    %v131 = vsel %vm84, %v55, 0
    %v134 = vsel %vm84, %v56, 0
    %v137 = vsel %vm84, %v57, 0
    %v140 = vsel %vm84, %v58, 0
    %v143 = vsel %vm84, %v59, 0
    %145 = vmatpush.xpose.msra.mxu0 %v143
    %146 = vmatpush.xpose.msra.mxu0 %v140
    %147 = vmatpush.xpose.msra.mxu0 %v137
    %148 = vmatpush.xpose.msra.mxu0 %v134
    %149 = vmatpush.xpose.msra.mxu0 %v131
    %150 = vmatpush.xpose.msra.mxu0 %v128
    %151 = vmatpush.xpose.msra.mxu0 %v125
    %152 = vmatpush.xpose.msra.mxu0 %v122
    %153 = vmatpush.xpose.msra.mxu0 %v119
    %154 = vmatpush.xpose.msra.mxu0 %v116
    %155 = vmatpush.xpose.msra.mxu0 %v113
    %156 = vmatpush.xpose.msra.mxu0 %v110
    %157 = vmatpush.xpose.msra.mxu0 %v107
    %158 = vmatpush.xpose.msra.mxu0 %v104
    %159 = vmatpush.xpose.msra.mxu0 %v101
    %160 = vmatpush.xpose.msra.mxu0 %v98
    %161 = vmatmul.f32.gmra.mxu0 %v86
    %v162 = vpop.f32.mrf.mxu0
    %v163 = vadd.f32 %v67, %v162
    %164 = vmatmul.f32.gmra.mxu0 %v89
    %v165 = vpop.f32.mrf.mxu0
    %v166 = vadd.f32 %v72, %v165
    %167 = vmatmul.f32.gmra.mxu0 %v92
    %v168 = vpop.f32.mrf.mxu0
    %v169 = vadd.f32 %v77, %v168
    %170 = vmatmul.f32.gmra.mxu0 %v95
    %v171 = vpop.f32.mrf.mxu0
    %v172 = vadd.f32 %v82, %v171
    %173 = vdwg.mxu0
    %v174 = vtanh.pop %v163
    %v175 = vtanh.pop %v166
    %v176 = vtanh.pop %v169
    %v177 = vtanh.pop %v172
    %v178 = vld [vmem:[%s6] sm:$0xff]
    %v179 = vld [vmem:[%s6 + $0x8] sm:$0xff]
    %v180 = vld [vmem:[%s6 + $0x10] sm:$0xff]
    %v181 = vld [vmem:[%s6 + $0x18] sm:$0xff]
    %v182 = vld [vmem:[%s1] sm:$0xff]
    %v183 = vld [vmem:[%s1 + $0x8] sm:$0xff]
    %v184 = vld [vmem:[%s1 + $0x10] sm:$0xff]
    %v185 = vld [vmem:[%s1 + $0x18] sm:$0xff]
    %v186 = vld [vmem:[%s1 + $0x20] sm:$0xff]
    %v187 = vld [vmem:[%s1 + $0x28] sm:$0xff]
    %v188 = vld [vmem:[%s1 + $0x30] sm:$0xff]
    %v189 = vld [vmem:[%s1 + $0x38] sm:$0xff]
    %v190 = vld [vmem:[%s1 + $0x40] sm:$0xff]
    %v191 = vld [vmem:[%s1 + $0x48] sm:$0xff]
    %v192 = vld [vmem:[%s1 + $0x50] sm:$0xff]
    %v193 = vld [vmem:[%s1 + $0x58] sm:$0xff]
    %v194 = vld [vmem:[%s1 + $0x60] sm:$0xff]
    %v195 = vld [vmem:[%s1 + $0x68] sm:$0xff]
    %v196 = vld [vmem:[%s1 + $0x70] sm:$0xff]
    %v197 = vld [vmem:[%s1 + $0x78] sm:$0xff]
    %v198 = vld [vmem:[%s7] sm:$0xff]
    %v199 = vld [vmem:[%s7 + $0x8] sm:$0xff]
    %v200 = vld [vmem:[%s7 + $0x10] sm:$0xff]
    %v201 = vld [vmem:[%s7 + $0x18] sm:$0xff]
    %203 = vset.pattern.permute.xlu0 0
    %204 = vperm.xlu0 %203, %v198
    %v205 = vpop.permute.xlu0 %204
    %208 = vset.pattern.permute.xlu0 0
    %209 = vperm.xlu0 %208, %v199
    %v210 = vpop.permute.xlu0 %209
    %213 = vset.pattern.permute.xlu0 0
    %214 = vperm.xlu0 %213, %v200
    %v215 = vpop.permute.xlu0 %214
    %218 = vset.pattern.permute.xlu0 0
    %219 = vperm.xlu0 %218, %v201
    %v220 = vpop.permute.xlu0 %219
    %vm222 = vcmask 64512
    %v224 = vsel %vm222, %v178, 0
    %v227 = vsel %vm222, %v179, 0
    %v230 = vsel %vm222, %v180, 0
    %v233 = vsel %vm222, %v181, 0
    %v236 = vsel %vm222, %v182, 0
    %v239 = vsel %vm222, %v183, 0
    %v242 = vsel %vm222, %v184, 0
    %v245 = vsel %vm222, %v185, 0
    %v248 = vsel %vm222, %v186, 0
    %v251 = vsel %vm222, %v187, 0
    %v254 = vsel %vm222, %v188, 0
    %v257 = vsel %vm222, %v189, 0
    %v260 = vsel %vm222, %v190, 0
    %v263 = vsel %vm222, %v191, 0
    %v266 = vsel %vm222, %v192, 0
    %v269 = vsel %vm222, %v193, 0
    %v272 = vsel %vm222, %v194, 0
    %v275 = vsel %vm222, %v195, 0
    %v278 = vsel %vm222, %v196, 0
    %v281 = vsel %vm222, %v197, 0
    %283 = vmatpush.xpose.msra.mxu0 %v281
    %284 = vmatpush.xpose.msra.mxu0 %v278
    %285 = vmatpush.xpose.msra.mxu0 %v275
    %286 = vmatpush.xpose.msra.mxu0 %v272
    %287 = vmatpush.xpose.msra.mxu0 %v269
    %288 = vmatpush.xpose.msra.mxu0 %v266
    %289 = vmatpush.xpose.msra.mxu0 %v263
    %290 = vmatpush.xpose.msra.mxu0 %v260
    %291 = vmatpush.xpose.msra.mxu0 %v257
    %292 = vmatpush.xpose.msra.mxu0 %v254
    %293 = vmatpush.xpose.msra.mxu0 %v251
    %294 = vmatpush.xpose.msra.mxu0 %v248
    %295 = vmatpush.xpose.msra.mxu0 %v245
    %296 = vmatpush.xpose.msra.mxu0 %v242
    %297 = vmatpush.xpose.msra.mxu0 %v239
    %298 = vmatpush.xpose.msra.mxu0 %v236
    %299 = vmatmul.f32.gmra.mxu0 %v224
    %v300 = vpop.f32.mrf.mxu0
    %v301 = vadd.f32 %v205, %v300
    %302 = vmatmul.f32.gmra.mxu0 %v227
    %v303 = vpop.f32.mrf.mxu0
    %v304 = vadd.f32 %v210, %v303
    %305 = vmatmul.f32.gmra.mxu0 %v230
    %v306 = vpop.f32.mrf.mxu0
    %v307 = vadd.f32 %v215, %v306
    %308 = vmatmul.f32.gmra.mxu0 %v233
    %v309 = vpop.f32.mrf.mxu0
    %v310 = vadd.f32 %v220, %v309
    %311 = vdwg.mxu0
    %v312 = vtanh.pop %v301
    %v313 = vtanh.pop %v304
    %v314 = vtanh.pop %v307
    %v315 = vtanh.pop %v310
    %v316 = vld [vmem:[%s4] sm:$0xff]
    %v317 = vld [vmem:[%s4 + $0x8] sm:$0xff]
    %v318 = vld [vmem:[%s4 + $0x10] sm:$0xff]
    %v319 = vld [vmem:[%s4 + $0x18] sm:$0xff]
    %v320 = vld [vmem:[%s5] sm:$0xff]
    %v321 = vld [vmem:[%s5 + $0x8] sm:$0xff]
    %v322 = vld [vmem:[%s5 + $0x10] sm:$0xff]
    %v323 = vld [vmem:[%s5 + $0x18] sm:$0xff]
    %325 = vset.pattern.permute.xlu0 0
    %326 = vperm.xlu0 %325, %v320
    %v327 = vpop.permute.xlu0 %326
    %330 = vset.pattern.permute.xlu0 0
    %331 = vperm.xlu0 %330, %v321
    %v332 = vpop.permute.xlu0 %331
    %335 = vset.pattern.permute.xlu0 0
    %336 = vperm.xlu0 %335, %v322
    %v337 = vpop.permute.xlu0 %336
    %340 = vset.pattern.permute.xlu0 0
    %341 = vperm.xlu0 %340, %v323
    %v342 = vpop.permute.xlu0 %341
    %vm344 = vcmask 261120
    %v346 = vsel %vm344, %v316, 0
    %v349 = vsel %vm344, %v317, 0
    %v352 = vsel %vm344, %v318, 0
    %v355 = vsel %vm344, %v319, 0
    %357 = vmatpush.msra.mxu0 0.0
    %358 = vmatpush.msra.mxu0 0.0
    %359 = vmatpush.msra.mxu0 0.0
    %360 = vmatpush.msra.mxu0 0.0
    %361 = vmatpush.msra.mxu0 0.0
    %362 = vmatpush.msra.mxu0 0.0
    %363 = vmatpush.msra.mxu0 0.0
    %364 = vmatpush.msra.mxu0 0.0
    %365 = vmatpush.msra.mxu0 0.0
    %366 = vmatpush.msra.mxu0 0.0
    %367 = vmatpush.msra.mxu0 0.0
    %368 = vmatpush.msra.mxu0 0.0
    %369 = vmatpush.msra.mxu0 %v177
    %370 = vmatpush.msra.mxu0 %v176
    %371 = vmatpush.msra.mxu0 %v175
    %372 = vmatpush.msra.mxu0 %v174
    %373 = vmatmul.f32.gmra.mxu0 %v346
    %v374 = vpop.f32.mrf.mxu0
    %v375 = vadd.f32 %v327, %v374
    %376 = vmatmul.f32.gmra.mxu0 %v349
    %v377 = vpop.f32.mrf.mxu0
    %v378 = vadd.f32 %v332, %v377
    %379 = vmatmul.f32.gmra.mxu0 %v352
    %v380 = vpop.f32.mrf.mxu0
    %v381 = vadd.f32 %v337, %v380
    %382 = vmatmul.f32.gmra.mxu0 %v355
    %v383 = vpop.f32.mrf.mxu0
    %v384 = vadd.f32 %v342, %v383
    %385 = vdwg.mxu0
    %v386 = vld [vmem:[%s8] sm:$0xff]
    %v387 = vld [vmem:[%s8 + $0x8] sm:$0xff]
    %v388 = vld [vmem:[%s8 + $0x10] sm:$0xff]
    %v389 = vld [vmem:[%s8 + $0x18] sm:$0xff]
    %v390 = vld [vmem:[%s9] sm:$0xff]
    %v391 = vld [vmem:[%s9 + $0x8] sm:$0xff]
    %v392 = vld [vmem:[%s9 + $0x10] sm:$0xff]
    %v393 = vld [vmem:[%s9 + $0x18] sm:$0xff]
    %395 = vset.pattern.permute.xlu0 0
    %396 = vperm.xlu0 %395, %v390
    %v397 = vpop.permute.xlu0 %396
    %400 = vset.pattern.permute.xlu0 0
    %401 = vperm.xlu0 %400, %v391
    %v402 = vpop.permute.xlu0 %401
    %405 = vset.pattern.permute.xlu0 0
    %406 = vperm.xlu0 %405, %v392
    %v407 = vpop.permute.xlu0 %406
    %410 = vset.pattern.permute.xlu0 0
    %411 = vperm.xlu0 %410, %v393
    %v412 = vpop.permute.xlu0 %411
    %v415 = vsel %vm344, %v386, 0
    %v418 = vsel %vm344, %v387, 0
    %v421 = vsel %vm344, %v388, 0
    %v424 = vsel %vm344, %v389, 0
    %426 = vmatpush.msra.mxu0 0.0
    %427 = vmatpush.msra.mxu0 0.0
    %428 = vmatpush.msra.mxu0 0.0
    %429 = vmatpush.msra.mxu0 0.0
    %430 = vmatpush.msra.mxu0 0.0
    %431 = vmatpush.msra.mxu0 0.0
    %432 = vmatpush.msra.mxu0 0.0
    %433 = vmatpush.msra.mxu0 0.0
    %434 = vmatpush.msra.mxu0 0.0
    %435 = vmatpush.msra.mxu0 0.0
    %436 = vmatpush.msra.mxu0 0.0
    %437 = vmatpush.msra.mxu0 0.0
    %438 = vmatpush.msra.mxu0 %v315
    %439 = vmatpush.msra.mxu0 %v314
    %440 = vmatpush.msra.mxu0 %v313
    %441 = vmatpush.msra.mxu0 %v312
    %442 = vmatmul.f32.gmra.mxu0 %v415
    %v443 = vpop.f32.mrf.mxu0
    %v444 = vadd.f32 %v397, %v443
    %445 = vmatmul.f32.gmra.mxu0 %v418
    %v446 = vpop.f32.mrf.mxu0
    %v447 = vadd.f32 %v402, %v446
    %448 = vmatmul.f32.gmra.mxu0 %v421
    %v449 = vpop.f32.mrf.mxu0
    %v450 = vadd.f32 %v407, %v449
    %451 = vmatmul.f32.gmra.mxu0 %v424
    %v452 = vpop.f32.mrf.mxu0
    %v453 = vadd.f32 %v412, %v452
    %454 = vdwg.mxu0
    %v455 = vmul.f32 %v375, %v444
    %v456 = vmul.f32 %v378, %v447
    %v457 = vmul.f32 %v381, %v450
    %v458 = vmul.f32 %v384, %v453
    %v459 = vadd.f32 %v455, %v456
    %v460 = vadd.f32 %v459, %v457
    %v461 = vadd.f32 %v460, %v458
    %v462 = vrot.slane %v461, 4
    %v463 = vadd.f32 %v461, %v462
    %v464 = vrot.slane %v463, 2
    %v465 = vadd.f32 %v463, %v464
    %v466 = vrot.slane %v465, 1
    %v467 = vadd.f32 %v465, %v466
    %s468 = sld [smem:[#allocation2]]
    %v469 = vstv %s468
    %v470 = vadd.f32 %v467, %v469
    %471 = vst [vmem:[#allocation3] sm:$0x1] %v470
    // Predicated region
    $region46: #{tpu_custom_call.1} parent=1 // pred_check
      _
    $region47: #{tpu_custom_call.1} parent=1 // pred_check_branch
      %473 = sbr.rel (0) target = $region49
    $region48: #{tpu_custom_call.1} parent=1 // pred_region
      %475 = vsyncadd [#allocation4], 0
      %s477 = sshll.u32 [#allocation3], 4
      %s478 = int_to_ptr.vmem [resolvable:$true] %s477
      %s479 = sshll.u32 %s11, 4
      %s480 = int_to_ptr.hbm [resolvable:$true] %s479
      %482 = dma.vmem_to_hbm [thread:$0]  %s478, 16, %s480, [#allocation4]
    $region49: #{tpu_custom_call.1} parent=1 // pred_fallthru
      _
    // Predicated region
    $region50: #{tpu_custom_call.1} parent=1 // pred_check
      _
    $region51: #{tpu_custom_call.1} parent=1 // pred_check_branch
      %484 = sbr.rel (0) target = $region53
    $region52: #{tpu_custom_call.1} parent=1 // pred_region
      %486 = dma.done [#allocation4], 16
    $region53: #{tpu_custom_call.1} parent=1 // pred_fallthru
      _
    %487 = vsyncpa [#allocation4], 1

</llo_original>
